<compile_context>
chip_gen: v7x
topology: tpu7x:2x2x1
jax: 0.10.0
libtpu: 0.0.40
codegen_flags: <defaults>
</compile_context>

<pallas_src>
import functools

import jax
import jax.numpy as jnp
from jax.experimental import pallas as pl
from jax.experimental.pallas import tpu as pltpu


def _round_up(n: int, m: int) -> int:
    return -(-n // m) * m


def _flownet_kernel(xy_ref, w1t_ref, b1_ref, w2_ref, b2_ref, out_ref):
    # Layer 1 (transposed): (Hp, d_in) @ (d_in, TB) -> (Hp, TB), + b1, ReLU.
    h = jnp.dot(w1t_ref[...], xy_ref[...], preferred_element_type=jnp.float32)
    h = jnp.maximum(h + b1_ref[...], 0.0)
    # Layer 2: (1, Hp) @ (Hp, TB) -> (1, TB); lane-dense output row.
    o = jnp.dot(w2_ref[...], h, preferred_element_type=jnp.float32)
    out_ref[...] = o + b2_ref[0, 0]


def prepare_params(params):
    """One-time repack of (w1, b1, w2, b2) into the kernel's layout.

    Convention (same as init_params below): w1 (d_in, hidden), b1 (hidden,),
    w2 (hidden, 1), b2 (1,), with forward = relu(xy @ w1 + b1) @ w2 + b2.

    Returns (w1t, b1c, w2r, b2s):
      w1t: (Hp, d_in) f32  -- W1^T, hidden zero-padded to a multiple of 8
      b1c: (Hp, 1)    f32
      w2r: (1, Hp)    f32
      b2s: (1, 1)     f32  -- passed to the kernel as an SMEM scalar
    Call ONCE per parameter set, not per forward step.
    """
    w1, b1, w2, b2 = params
    d_in, hidden = w1.shape
    Hp = _round_up(hidden, 8)
    w1t = jnp.zeros((Hp, d_in), jnp.float32).at[:hidden, :].set(
        jnp.asarray(w1, jnp.float32).T
    )
    b1c = jnp.zeros((Hp, 1), jnp.float32).at[:hidden, 0].set(
        jnp.asarray(b1, jnp.float32)
    )
    w2r = jnp.zeros((1, Hp), jnp.float32).at[0, :hidden].set(
        jnp.asarray(w2, jnp.float32)[:, 0]
    )
    b2s = jnp.asarray(b2, jnp.float32).reshape(1, 1)
    return w1t, b1c, w2r, b2s


@functools.partial(jax.jit, static_argnames=("block_b",))
def flownet_forward(x, y, prepared, *, block_b=4096):
    """x: (B, d_x), y: (B, d_y) -> (B,) scalar flow values (f32)."""
    w1t, b1c, w2r, b2s = prepared
    B, d_x = x.shape
    d_y = y.shape[1]
    d_in = d_x + d_y
    Hp = w1t.shape[0]
    assert w1t.shape[1] == d_in, (w1t.shape, d_in)

    # ---- balanced, lane-aligned batch tiles under the requested cap ----
    nt = -(-B // block_b)                 # number of batch tiles (>= 1)
    tb = _round_up(-(-B // nt), 128)      # balanced tile size, 128-aligned
    nt = -(-B // tb)
    Bp = nt * tb

    # ---- batch-on-lanes activation slab: (d_in, Bp); columns >= B are 0 ----
    # Single merged operand (no separate x/y streams, no bf16 copies); the
    # kernel then streams long contiguous HBM rows per tile.
    xy = jnp.concatenate(
        [x.astype(jnp.float32), y.astype(jnp.float32)], axis=-1
    )  # (B, d_in)
    xy_t = jnp.zeros((d_in, Bp), jnp.float32).at[:, :B].set(xy.T)

    out = pl.pallas_call(
        _flownet_kernel,
        out_shape=jax.ShapeDtypeStruct((1, Bp), jnp.float32),
        grid=(nt,),
        in_specs=[
            pl.BlockSpec((d_in, tb), lambda i: (0, i)),        # activations (streamed)
            pl.BlockSpec((Hp, d_in), lambda i: (0, 0)),        # W1^T (VMEM-resident)
            pl.BlockSpec((Hp, 1), lambda i: (0, 0)),           # b1   (VMEM-resident)
            pl.BlockSpec((1, Hp), lambda i: (0, 0)),           # w2^T (VMEM-resident)
            pl.BlockSpec(memory_space=pltpu.MemorySpace.SMEM), # b2 scalar
        ],
        out_specs=pl.BlockSpec((1, tb), lambda i: (0, i)),     # lane-dense row
        compiler_params=pltpu.CompilerParams(
            dimension_semantics=("parallel",),
        ),
    )(xy_t, w1t, b1c, w2r, b2s)

    # squeeze(-1) + drop padded batch columns (out[:, B:] is never valid).
    return out[0, :B]


def init_params(key, d_in, hidden):
    """PyTorch-Linear-style init: U(-1/sqrt(fan_in), 1/sqrt(fan_in))."""
    k1, k2, k3, k4 = jax.random.split(key, 4)
    bound1 = 1.0 / (d_in ** 0.5)
    bound2 = 1.0 / (hidden ** 0.5)
    w1 = jax.random.uniform(k1, (d_in, hidden), jnp.float32, -bound1, bound1)
    b1 = jax.random.uniform(k2, (hidden,), jnp.float32, -bound1, bound1)
    w2 = jax.random.uniform(k3, (hidden, 1), jnp.float32, -bound2, bound2)
    b2 = jax.random.uniform(k4, (1,), jnp.float32, -bound2, bound2)
    return w1, b1, w2, b2


if __name__ == "__main__":
    # Small shapes consistent with the module: d_x=6, d_y=2, hidden_dims=(64,).
    B, d_x, d_y, hidden = 300, 6, 2, 64

    key = jax.random.PRNGKey(0)
    kx, ky, kp = jax.random.split(key, 3)
    x = jax.random.normal(kx, (B, d_x), jnp.float32)
    y = jax.random.normal(ky, (B, d_y), jnp.float32)
    params = init_params(kp, d_x + d_y, hidden)
    prepared = prepare_params(params)  # one-time weight repack

    # block_b=256 -> 2-step grid (exercises streaming + batch padding);
    # default block_b=4096 -> single tile for this small B.
    out_small = jax.block_until_ready(flownet_forward(x, y, prepared, block_b=256))
    out = jax.block_until_ready(flownet_forward(x, y, prepared))
    assert out.shape == (B,), out.shape
    assert out_small.shape == (B,), out_small.shape

    # Full-f32 reference of the PyTorch module.
    w1, b1, w2, b2 = params
    xy = jnp.concatenate([x, y], axis=-1)
    ref = (jnp.maximum(xy @ w1 + b1[None, :], 0.0) @ w2 + b2)[:, 0]

    err = float(jnp.max(jnp.abs(out - ref)))
    err_small = float(jnp.max(jnp.abs(out_small - ref)))
    assert jnp.allclose(out, ref, atol=1e-2, rtol=1e-2), err
    assert jnp.allclose(out_small, ref, atol=1e-2, rtol=1e-2), err_small

    print("KERNEL_OK")
</pallas_src>

<mosaic_0001>
module attributes {stable_mosaic.version = 11 : i64} {
  func.func @_flownet_kernel(%arg0: i32, %arg1: memref<8x256xf32, #tpu.memory_space<vmem>>, %arg2: memref<64x8xf32, #tpu.memory_space<vmem>>, %arg3: memref<64x1xf32, #tpu.memory_space<vmem>>, %arg4: memref<1x64xf32, #tpu.memory_space<vmem>>, %arg5: memref<1x1xf32, #tpu.memory_space<smem>>, %arg6: memref<1x256xf32, #tpu.memory_space<vmem>>) attributes {dimension_semantics = [#tpu.dimension_semantics<parallel>], iteration_bounds = array<i64: 2>, scalar_prefetch = 0 : i64, scratch_operands = 0 : i64, tpu.core_type = #tpu.core_type<tc>, window_params = [{transform_indices = @transform_0, window_bounds = array<i64: 8, 256>}, {pipeline_mode = #tpu.pipeline_mode<synchronous>, transform_indices = @transform_1, window_bounds = array<i64: 64, 8>}, {pipeline_mode = #tpu.pipeline_mode<synchronous>, transform_indices = @transform_2, window_bounds = array<i64: 64, 1>}, {pipeline_mode = #tpu.pipeline_mode<synchronous>, transform_indices = @transform_3, window_bounds = array<i64: 1, 64>}, {transform_indices = @transform_4, window_bounds = array<i64: 1, 1>}, {transform_indices = @transform_5, window_bounds = array<i64: 1, 256>}]} {
    %c0 = arith.constant 0 : index
    %c0_0 = arith.constant 0 : index
    %0 = vector.load %arg2[%c0, %c0_0] : memref<64x8xf32, #tpu.memory_space<vmem>>, vector<64x8xf32>
    %c0_1 = arith.constant 0 : index
    %c0_2 = arith.constant 0 : index
    %1 = vector.load %arg1[%c0_1, %c0_2] : memref<8x256xf32, #tpu.memory_space<vmem>>, vector<8x256xf32>
    %cst = arith.constant dense<0.000000e+00> : vector<64x256xf32>
    %2 = tpu.matmul %0, %1, %cst {dimension_numbers = #tpu.dot_dimension_numbers<[1], [0], [0], [1], [0, 0, 1, 1], [], []>} : vector<64x8xf32>, vector<8x256xf32>, vector<64x256xf32> -> vector<64x256xf32>
    %c0_3 = arith.constant 0 : index
    %c0_4 = arith.constant 0 : index
    %3 = vector.load %arg3[%c0_3, %c0_4] : memref<64x1xf32, #tpu.memory_space<vmem>>, vector<64x1xf32>
    %4 = vector.broadcast %3 : vector<64x1xf32> to vector<64x256xf32>
    %5 = arith.addf %2, %4 : vector<64x256xf32>
    %cst_5 = arith.constant 0.000000e+00 : f32
    %6 = vector.broadcast %cst_5 : f32 to vector<64x256xf32>
    %7 = arith.maximumf %5, %6 : vector<64x256xf32>
    %c0_6 = arith.constant 0 : index
    %c0_7 = arith.constant 0 : index
    %8 = vector.load %arg4[%c0_6, %c0_7] : memref<1x64xf32, #tpu.memory_space<vmem>>, vector<1x64xf32>
    %cst_8 = arith.constant dense<0.000000e+00> : vector<1x256xf32>
    %9 = tpu.matmul %8, %7, %cst_8 {dimension_numbers = #tpu.dot_dimension_numbers<[1], [0], [0], [1], [0, 0, 1, 1], [], []>} : vector<1x64xf32>, vector<64x256xf32>, vector<1x256xf32> -> vector<1x256xf32>
    %c0_9 = arith.constant 0 : index
    %c0_10 = arith.constant 0 : index
    %10 = memref.load %arg5[%c0_9, %c0_10] : memref<1x1xf32, #tpu.memory_space<smem>>
    %11 = vector.broadcast %10 : f32 to vector<1x256xf32>
    %12 = arith.addf %9, %11 : vector<1x256xf32>
    %c0_11 = arith.constant 0 : index
    %c0_12 = arith.constant 0 : index
    %13 = vector.load %arg6[%c0_11, %c0_12] : memref<1x256xf32, #tpu.memory_space<vmem>>, vector<1x256xf32>
    tpu.vector_store %arg6[%c0_11, %c0_12], %12 {strides = array<i32>} : memref<1x256xf32, #tpu.memory_space<vmem>>, vector<1x256xf32>,
    return
  }
  func.func @transform_0(%arg0: i32) -> (i32, i32) {
    %c0_i32 = arith.constant 0 : i32
    %c0_i32_0 = arith.constant 0 : i32
    return %c0_i32, %arg0 : i32, i32
  }
  func.func @transform_1(%arg0: i32) -> (i32, i32) {
    %c0_i32 = arith.constant 0 : i32
    %c0_i32_0 = arith.constant 0 : i32
    %c0_i32_1 = arith.constant 0 : i32
    return %c0_i32, %c0_i32_0 : i32, i32
  }
  func.func @transform_2(%arg0: i32) -> (i32, i32) {
    %c0_i32 = arith.constant 0 : i32
    %c0_i32_0 = arith.constant 0 : i32
    %c0_i32_1 = arith.constant 0 : i32
    return %c0_i32, %c0_i32_0 : i32, i32
  }
  func.func @transform_3(%arg0: i32) -> (i32, i32) {
    %c0_i32 = arith.constant 0 : i32
    %c0_i32_0 = arith.constant 0 : i32
    %c0_i32_1 = arith.constant 0 : i32
    return %c0_i32, %c0_i32_0 : i32, i32
  }
  func.func @transform_4(%arg0: i32) -> (i32, i32) {
    %c0_i32 = arith.constant 0 : i32
    %c0_i32_0 = arith.constant 0 : i32
    %c0_i32_1 = arith.constant 0 : i32
    return %c0_i32, %c0_i32_0 : i32, i32
  }
  func.func @transform_5(%arg0: i32) -> (i32, i32) {
    %c0_i32 = arith.constant 0 : i32
    %c0_i32_0 = arith.constant 0 : i32
    return %c0_i32, %arg0 : i32, i32
  }
}

</mosaic_0001>

<llo_original>
// kernel: flownet_forward.1
$region0: #{flownet_forward.1}
  #allocation0 [shape = 'u32[]', space=smem, size = 0x4, offset = 0x4, fixed_abs, tag = 'smem constant byte address 0x4 - core index']
  #allocation1 [shape = 'u32[144,128]{1,0:T(1,128)}', space=vmem, size = 0x12000, scoped, tag = 'internal scratch']
  #allocation2 [shape = 'f32[1,1]{1,0:T(1,128)S(6)}', space=smem, size = 0x200, scoped, tag = 'scoped memory for flownet_forward.1']
  %s0 = inlined_call_operand.vmem [shape: f32[8,512], index: 0, kind: input, shape index: {}]
  %s1 = inlined_call_operand.vmem [shape: f32[64,8], index: 1, kind: input, shape index: {}]
  %s2 = inlined_call_operand.vmem [shape: f32[64,1], index: 2, kind: input, shape index: {}]
  %s3 = inlined_call_operand.vmem [shape: f32[1,64], index: 3, kind: input, shape index: {}]
  %s4 = inlined_call_operand.<no memory space> [shape: f32[1,1], index: 4, kind: input, shape index: {}]
  %s5 = inlined_call_operand.vmem [shape: f32[1,512], index: 5, kind: output, shape index: {}]
  %s6 = sld [smem:[#allocation0]]
  $region53: #{flownet_forward.1} parent=0
    _
  %s8 = ssub.s32 1, %s6
  %s9 = scalar_select 0, %s8, %s6
  %10 = sst [smem:[#allocation2]] %s4
  loop: start=0, step=1, limit=4
  $region2: #{flownet_forward.1} parent=0 // loop_pre_header
    _
  $region3: #{flownet_forward.1} parent=0 // loop_header
    %s12 = sphi 0, %s16
    %p13 = scmp.ge.s32.totalorder %s12, 4
    %s22 = sphi 0, %s24
    %s25 = sphi 0, %s22
    %s26 = sphi 0, %s25
    %s42 = sphi 0, %s26
    %s46 = sphi 0, %s46
    %s48 = sphi 0, %s46
    %s49 = sphi 0, %s48
    %s63 = sphi 0, %s49
    %s67 = sphi 0, %s67
    %s69 = sphi 0, %s67
    %s70 = sphi 0, %s69
    %s84 = sphi 0, %s70
    %s88 = sphi 0, %s88
    %s90 = sphi 0, %s88
    %s91 = sphi 0, %s90
    %s105 = sphi 0, %s91
    %s109 = sphi 0, %s109
    %s111 = sphi 0, %s109
    %s112 = sphi 0, %s111
    %s126 = sphi 0, %s112
    %s132 = sphi 0, %s134
    %s135 = sphi 0, %s132
    %s136 = sphi 0, %s135
    %s152 = sphi 0, %s136
  $region4: #{flownet_forward.1} parent=0 // loop_header_branch
    %15 = sbr.rel (%p13) target = $region8
  $region5: #{flownet_forward.1} parent=0 // loop_body
    %s17 = ssub.s32 %s12, 1
    %s18 = ssub.s32 %s12, 2
    %s19 = sadd.s32 %s12, 1
    %s20 = ssub.s32 %s12, %s19
    %p21 = scmp.eq.s32.totalorder %s20, 0
    %s23 = sadd.s32 %s22, 1
    %s24 = scalar_select %p21, %s22, %s23
    %p27 = pneg %p21
    %p28 = scmp.eq.s32.totalorder %s12, 1
    %p29 = por %p27, %p28
    %p30 = scmp.ne.s32.totalorder %s22, %s25
    %p31 = scmp.eq.s32.totalorder %s12, 0
    %p32 = por %p30, %p31
    %p33 = scmp.ne.s32.totalorder %s22, %s25
    %p34 = scmp.eq.s32.totalorder %s17, 1
    %p35 = por %p33, %p34
    %p36 = scmp.ne.s32.totalorder %s25, %s26
    %p37 = scmp.eq.s32.totalorder %s17, 0
    %p38 = por %p36, %p37
    %p39 = scmp.ne.s32.totalorder %s25, %s26
    %p40 = scmp.eq.s32.totalorder %s18, 1
    %p41 = por %p39, %p40
    %p43 = scmp.ne.s32.totalorder %s26, %s42
    %p44 = scmp.eq.s32.totalorder %s18, 0
    %p45 = por %p43, %p44
    %s47 = sadd.s32 %s46, 1
    %p50 = scmp.eq.s32.totalorder %s12, 1
    %p51 = scmp.ne.s32.totalorder %s46, %s48
    %p52 = scmp.eq.s32.totalorder %s12, 0
    %p53 = por %p51, %p52
    %p54 = scmp.ne.s32.totalorder %s46, %s48
    %p55 = scmp.eq.s32.totalorder %s17, 1
    %p56 = por %p54, %p55
    %p57 = scmp.ne.s32.totalorder %s48, %s49
    %p58 = scmp.eq.s32.totalorder %s17, 0
    %p59 = por %p57, %p58
    %p60 = scmp.ne.s32.totalorder %s48, %s49
    %p61 = scmp.eq.s32.totalorder %s18, 1
    %p62 = por %p60, %p61
    %p64 = scmp.ne.s32.totalorder %s49, %s63
    %p65 = scmp.eq.s32.totalorder %s18, 0
    %p66 = por %p64, %p65
    %s68 = sadd.s32 %s67, 1
    %p71 = scmp.eq.s32.totalorder %s12, 1
    %p72 = scmp.ne.s32.totalorder %s67, %s69
    %p73 = scmp.eq.s32.totalorder %s12, 0
    %p74 = por %p72, %p73
    %p75 = scmp.ne.s32.totalorder %s67, %s69
    %p76 = scmp.eq.s32.totalorder %s17, 1
    %p77 = por %p75, %p76
    %p78 = scmp.ne.s32.totalorder %s69, %s70
    %p79 = scmp.eq.s32.totalorder %s17, 0
    %p80 = por %p78, %p79
    %p81 = scmp.ne.s32.totalorder %s69, %s70
    %p82 = scmp.eq.s32.totalorder %s18, 1
    %p83 = por %p81, %p82
    %p85 = scmp.ne.s32.totalorder %s70, %s84
    %p86 = scmp.eq.s32.totalorder %s18, 0
    %p87 = por %p85, %p86
    %s89 = sadd.s32 %s88, 1
    %p92 = scmp.eq.s32.totalorder %s12, 1
    %p93 = scmp.ne.s32.totalorder %s88, %s90
    %p94 = scmp.eq.s32.totalorder %s12, 0
    %p95 = por %p93, %p94
    %p96 = scmp.ne.s32.totalorder %s88, %s90
    %p97 = scmp.eq.s32.totalorder %s17, 1
    %p98 = por %p96, %p97
    %p99 = scmp.ne.s32.totalorder %s90, %s91
    %p100 = scmp.eq.s32.totalorder %s17, 0
    %p101 = por %p99, %p100
    %p102 = scmp.ne.s32.totalorder %s90, %s91
    %p103 = scmp.eq.s32.totalorder %s18, 1
    %p104 = por %p102, %p103
    %p106 = scmp.ne.s32.totalorder %s91, %s105
    %p107 = scmp.eq.s32.totalorder %s18, 0
    %p108 = por %p106, %p107
    %s110 = sadd.s32 %s109, 1
    %p113 = scmp.eq.s32.totalorder %s12, 1
    %p114 = scmp.ne.s32.totalorder %s109, %s111
    %p115 = scmp.eq.s32.totalorder %s12, 0
    %p116 = por %p114, %p115
    %p117 = scmp.ne.s32.totalorder %s109, %s111
    %p118 = scmp.eq.s32.totalorder %s17, 1
    %p119 = por %p117, %p118
    %p120 = scmp.ne.s32.totalorder %s111, %s112
    %p121 = scmp.eq.s32.totalorder %s17, 0
    %p122 = por %p120, %p121
    %p123 = scmp.ne.s32.totalorder %s111, %s112
    %p124 = scmp.eq.s32.totalorder %s18, 1
    %p125 = por %p123, %p124
    %p127 = scmp.ne.s32.totalorder %s112, %s126
    %p128 = scmp.eq.s32.totalorder %s18, 0
    %p129 = por %p127, %p128
    %s130 = ssub.s32 %s12, %s19
    %p131 = scmp.eq.s32.totalorder %s130, 0
    %s133 = sadd.s32 %s132, 1
    %s134 = scalar_select %p131, %s132, %s133
    %p137 = pneg %p131
    %p138 = scmp.eq.s32.totalorder %s12, 1
    %p139 = por %p137, %p138
    %p140 = scmp.ne.s32.totalorder %s132, %s135
    %p141 = scmp.eq.s32.totalorder %s12, 0
    %p142 = por %p140, %p141
    %p143 = scmp.ne.s32.totalorder %s132, %s135
    %p144 = scmp.eq.s32.totalorder %s17, 1
    %p145 = por %p143, %p144
    %p146 = scmp.ne.s32.totalorder %s135, %s136
    %p147 = scmp.eq.s32.totalorder %s17, 0
    %p148 = por %p146, %p147
    %p149 = scmp.ne.s32.totalorder %s135, %s136
    %p150 = scmp.eq.s32.totalorder %s18, 1
    %p151 = por %p149, %p150
    %p153 = scmp.ne.s32.totalorder %s136, %s152
    %p154 = scmp.eq.s32.totalorder %s18, 0
    %p155 = por %p153, %p154
    %p156 = scmp.le.s32.totalorder 1, %s12
    %p157 = scmp.lt.s32.totalorder %s12, 3
    %p158 = pnand %p156, %p157
    %p159 = pneg %p158
    // Predicated region
    $region9: #{flownet_forward.1} parent=5 // pred_check
      _
    $region10: #{flownet_forward.1} parent=5 // pred_check_branch
      %161 = sbr.rel (%p158) target = $region12
    $region11: #{flownet_forward.1} parent=5 // pred_region
      %s162 = ssub.s32 %s12, 1
      // Predicated region
      $region13: #{flownet_forward.1} parent=11 // pred_check
        %p163 = pneg %p59
      $region14: #{flownet_forward.1} parent=11 // pred_check_branch
        %165 = sbr.rel (%p163) target = $region16
      $region15: #{flownet_forward.1} parent=11 // pred_region
        _
      $region16: #{flownet_forward.1} parent=11 // pred_fallthru
        _
      // Predicated region
      $region17: #{flownet_forward.1} parent=11 // pred_check
        %p166 = pneg %p80
      $region18: #{flownet_forward.1} parent=11 // pred_check_branch
        %168 = sbr.rel (%p166) target = $region20
      $region19: #{flownet_forward.1} parent=11 // pred_region
        _
      $region20: #{flownet_forward.1} parent=11 // pred_fallthru
        _
      // Predicated region
      $region21: #{flownet_forward.1} parent=11 // pred_check
        %p169 = pneg %p101
      $region22: #{flownet_forward.1} parent=11 // pred_check_branch
        %171 = sbr.rel (%p169) target = $region24
      $region23: #{flownet_forward.1} parent=11 // pred_region
        _
      $region24: #{flownet_forward.1} parent=11 // pred_fallthru
        _
      // Predicated region
      $region25: #{flownet_forward.1} parent=11 // pred_check
        %p172 = pneg %p122
      $region26: #{flownet_forward.1} parent=11 // pred_check_branch
        %174 = sbr.rel (%p172) target = $region28
      $region27: #{flownet_forward.1} parent=11 // pred_region
        _
      $region28: #{flownet_forward.1} parent=11 // pred_fallthru
        _
    $region12: #{flownet_forward.1} parent=5 // pred_fallthru
      _
    %p175 = scmp.lt.s32.totalorder %s12, 2
    // Predicated region
    $region29: #{flownet_forward.1} parent=5 // pred_check
      %p176 = pneg %p175
    $region30: #{flownet_forward.1} parent=5 // pred_check_branch
      %178 = sbr.rel (%p176) target = $region32
    $region31: #{flownet_forward.1} parent=5 // pred_region
      // Predicated region
      $region33: #{flownet_forward.1} parent=31 // pred_check
        %p179 = pneg %p32
      $region34: #{flownet_forward.1} parent=31 // pred_check_branch
        %181 = sbr.rel (%p179) target = $region36
      $region35: #{flownet_forward.1} parent=31 // pred_region
        %s182 = smul.u32 2, %s12
        %p183 = scmp.lt.s32.totalorder %s182, 3
        %s184 = scalar_select %p183, %s182, 3
        %s185 = smul.addr %s184, 8
        %s186 = scalar_lea.vmem %s0, %s185
        %s187 = smul.u32 2, %s12
      $region36: #{flownet_forward.1} parent=31 // pred_fallthru
        _
    $region32: #{flownet_forward.1} parent=5 // pred_fallthru
      _
    %p188 = scmp.le.s32.totalorder 1, %s12
    %p189 = scmp.lt.s32.totalorder %s12, 3
    %p190 = pnand %p188, %p189
    %p191 = pneg %p190
    // Predicated region
    $region37: #{flownet_forward.1} parent=5 // pred_check
      _
    $region38: #{flownet_forward.1} parent=5 // pred_check_branch
      %193 = sbr.rel (%p190) target = $region40
    $region39: #{flownet_forward.1} parent=5 // pred_region
      %s194 = ssub.s32 %s12, 1
      %s195 = smul.u32 2, %s17
      %p196 = scmp.lt.s32.totalorder %s195, 3
      %s197 = scalar_select %p196, %s195, 3
      %s198 = smul.addr %s197, 8
      %s199 = scalar_lea.vmem %s0, %s198
      %p200 = pneg %p38
      %p201 = pneg %p35
      %p202 = pneg %p59
      %p203 = pneg %p56
      %p204 = pneg %p80
      %p205 = pneg %p77
      %p206 = pneg %p101
      %p207 = pneg %p98
      %p208 = pneg %p122
      %p209 = pneg %p119
      %p210 = pneg %p148
      %p211 = pneg %p145
      %s212 = smul.u32 2, %s17
      %p213 = scmp.lt.s32.totalorder %s212, 3
      %s214 = scalar_select %p213, %s212, 3
      %s215 = scalar_lea.vmem %s5, %s214
      %s216 = smul.u32 2, %s17
      %p217 = scmp.lt.s32.totalorder %s216, 3
      %s218 = scalar_select %p217, %s216, 3
      %s219 = smul.addr %s218, 8
      %s220 = scalar_lea.vmem %s0, %s219
      %s221 = smul.u32 2, %s17
      %s222 = smul.u32 2, %s17
      %p223 = scmp.lt.s32.totalorder %s222, 3
      %s224 = scalar_select %p223, %s222, 3
      %s225 = scalar_lea.vmem %s5, %s224
      %s226 = smul.u32 2, %s17
      %v227 = vld [vmem:[%s1] sm:$0xff]
      %v228 = vld [vmem:[%s1 + $0x8] sm:$0xff]
      %v229 = vld [vmem:[%s1 + $0x10] sm:$0xff]
      %v230 = vld [vmem:[%s1 + $0x18] sm:$0xff]
      %v231 = vld [vmem:[%s1 + $0x20] sm:$0xff]
      %v232 = vld [vmem:[%s1 + $0x28] sm:$0xff]
      %v233 = vld [vmem:[%s1 + $0x30] sm:$0xff]
      %v234 = vld [vmem:[%s1 + $0x38] sm:$0xff]
      %v235 = vld [vmem:[%s220] sm:$0xff]
      %v236 = vld [vmem:[%s220 + $0x8] sm:$0xff]
      %v237 = vld [vmem:[%s2] sm:$0xff]
      %v238 = vld [vmem:[%s2 + $0x8] sm:$0xff]
      %v239 = vld [vmem:[%s2 + $0x10] sm:$0xff]
      %v240 = vld [vmem:[%s2 + $0x18] sm:$0xff]
      %v241 = vld [vmem:[%s2 + $0x20] sm:$0xff]
      %v242 = vld [vmem:[%s2 + $0x28] sm:$0xff]
      %v243 = vld [vmem:[%s2 + $0x30] sm:$0xff]
      %v244 = vld [vmem:[%s2 + $0x38] sm:$0xff]
      %246 = vset.pattern.permute.xlu0 0
      %247 = vperm.xlu0 %246, %v237
      %v248 = vpop.permute.xlu0 %247
      %251 = vset.pattern.permute.xlu0 0
      %252 = vperm.xlu0 %251, %v238
      %v253 = vpop.permute.xlu0 %252
      %256 = vset.pattern.permute.xlu0 0
      %257 = vperm.xlu0 %256, %v239
      %v258 = vpop.permute.xlu0 %257
      %261 = vset.pattern.permute.xlu0 0
      %262 = vperm.xlu0 %261, %v240
      %v263 = vpop.permute.xlu0 %262
      %266 = vset.pattern.permute.xlu0 0
      %267 = vperm.xlu0 %266, %v241
      %v268 = vpop.permute.xlu0 %267
      %271 = vset.pattern.permute.xlu0 0
      %272 = vperm.xlu0 %271, %v242
      %v273 = vpop.permute.xlu0 %272
      %276 = vset.pattern.permute.xlu0 0
      %277 = vperm.xlu0 %276, %v243
      %v278 = vpop.permute.xlu0 %277
      %281 = vset.pattern.permute.xlu0 0
      %282 = vperm.xlu0 %281, %v244
      %v283 = vpop.permute.xlu0 %282
      %vm285 = vcmask 64512
      %v287 = vsel %vm285, %v227, 0
      %v290 = vsel %vm285, %v228, 0
      %v293 = vsel %vm285, %v229, 0
      %v296 = vsel %vm285, %v230, 0
      %v299 = vsel %vm285, %v231, 0
      %v302 = vsel %vm285, %v232, 0
      %v305 = vsel %vm285, %v233, 0
      %v308 = vsel %vm285, %v234, 0
      %310 = vmatprep.subr.mxu0 %v236
      %311 = vmatpush1.msra.mxu0 %v235
      %312 = vmatprep.subr.mxu0 0.0
      %313 = vmatpush1.msra.mxu0 0.0
      %314 = vmatprep.subr.mxu0 0.0
      %315 = vmatpush1.msra.mxu0 0.0
      %316 = vmatprep.subr.mxu0 0.0
      %317 = vmatpush1.msra.mxu0 0.0
      %318 = vmatprep.subr.mxu0 0.0
      %319 = vmatpush1.msra.mxu0 0.0
      %320 = vmatprep.subr.mxu0 0.0
      %321 = vmatpush1.msra.mxu0 0.0
      %322 = vmatprep.subr.mxu0 0.0
      %323 = vmatpush1.msra.mxu0 0.0
      %324 = vmatprep.subr.mxu0 0.0
      %325 = vmatpush1.msra.mxu0 0.0
      %326 = vmatprep.subr.mxu0 0.0
      %327 = vmatpush1.msra.mxu0 0.0
      %328 = vmatprep.subr.mxu0 0.0
      %329 = vmatpush1.msra.mxu0 0.0
      %330 = vmatprep.subr.mxu0 0.0
      %331 = vmatpush1.msra.mxu0 0.0
      %332 = vmatprep.subr.mxu0 0.0
      %333 = vmatpush1.msra.mxu0 0.0
      %334 = vmatprep.subr.mxu0 0.0
      %335 = vmatpush1.msra.mxu0 0.0
      %336 = vmatprep.subr.mxu0 0.0
      %337 = vmatpush1.msra.mxu0 0.0
      %338 = vmatprep.subr.mxu0 0.0
      %339 = vmatpush1.msra.mxu0 0.0
      %340 = vmatprep.subr.mxu0 0.0
      %341 = vmatpush1.msra.mxu0 0.0
      %342 = vmatprep.subr.mxu0 0.0
      %343 = vmatpush1.msra.mxu0 0.0
      %344 = vmatprep.subr.mxu0 0.0
      %345 = vmatpush1.msra.mxu0 0.0
      %346 = vmatprep.subr.mxu0 0.0
      %347 = vmatpush1.msra.mxu0 0.0
      %348 = vmatprep.subr.mxu0 0.0
      %349 = vmatpush1.msra.mxu0 0.0
      %350 = vmatprep.subr.mxu0 0.0
      %351 = vmatpush1.msra.mxu0 0.0
      %352 = vmatprep.subr.mxu0 0.0
      %353 = vmatpush1.msra.mxu0 0.0
      %354 = vmatprep.subr.mxu0 0.0
      %355 = vmatpush1.msra.mxu0 0.0
      %356 = vmatprep.subr.mxu0 0.0
      %357 = vmatpush1.msra.mxu0 0.0
      %358 = vmatprep.subr.mxu0 0.0
      %359 = vmatpush1.msra.mxu0 0.0
      %360 = vmatprep.subr.mxu0 0.0
      %361 = vmatpush1.msra.mxu0 0.0
      %362 = vmatprep.subr.mxu0 0.0
      %363 = vmatpush1.msra.mxu0 0.0
      %364 = vmatprep.subr.mxu0 0.0
      %365 = vmatpush1.msra.mxu0 0.0
      %366 = vmatprep.subr.mxu0 0.0
      %367 = vmatpush1.msra.mxu0 0.0
      %368 = vmatprep.subr.mxu0 0.0
      %369 = vmatpush1.msra.mxu0 0.0
      %370 = vmatprep.subr.mxu0 0.0
      %371 = vmatpush1.msra.mxu0 0.0
      %372 = vmatprep.subr.mxu0 0.0
      %373 = vmatpush1.msra.mxu0 0.0
      %374 = vmatprep.mubr.f32.mxu0 0.0
      %375 = vmatmul.mubr.f32.gmra.mrb[0].mxu0 %v287
      %v376 = vpop.f32.mrb[0].mxu0
      %v377 = vadd.f32 %v248, %v376
      %v378 = vpop.f32.mrb[0].mxu0
      %v379 = vadd.f32 %v248, %v378
      %380 = vmatprep.mubr.f32.mxu0 0.0
      %381 = vmatmul.mubr.f32.gmra.mrb[0].mxu0 %v290
      %v382 = vpop.f32.mrb[0].mxu0
      %v383 = vadd.f32 %v253, %v382
      %v384 = vpop.f32.mrb[0].mxu0
      %v385 = vadd.f32 %v253, %v384
      %386 = vmatprep.mubr.f32.mxu0 0.0
      %387 = vmatmul.mubr.f32.gmra.mrb[0].mxu0 %v293
      %v388 = vpop.f32.mrb[0].mxu0
      %v389 = vadd.f32 %v258, %v388
      %v390 = vpop.f32.mrb[0].mxu0
      %v391 = vadd.f32 %v258, %v390
      %392 = vmatprep.mubr.f32.mxu0 0.0
      %393 = vmatmul.mubr.f32.gmra.mrb[0].mxu0 %v296
      %v394 = vpop.f32.mrb[0].mxu0
      %v395 = vadd.f32 %v263, %v394
      %v396 = vpop.f32.mrb[0].mxu0
      %v397 = vadd.f32 %v263, %v396
      %398 = vmatprep.mubr.f32.mxu0 0.0
      %399 = vmatmul.mubr.f32.gmra.mrb[0].mxu0 %v299
      %v400 = vpop.f32.mrb[0].mxu0
      %v401 = vadd.f32 %v268, %v400
      %v402 = vpop.f32.mrb[0].mxu0
      %v403 = vadd.f32 %v268, %v402
      %404 = vmatprep.mubr.f32.mxu0 0.0
      %405 = vmatmul.mubr.f32.gmra.mrb[0].mxu0 %v302
      %v406 = vpop.f32.mrb[0].mxu0
      %v407 = vadd.f32 %v273, %v406
      %v408 = vpop.f32.mrb[0].mxu0
      %v409 = vadd.f32 %v273, %v408
      %410 = vmatprep.mubr.f32.mxu0 0.0
      %411 = vmatmul.mubr.f32.gmra.mrb[0].mxu0 %v305
      %v412 = vpop.f32.mrb[0].mxu0
      %v413 = vadd.f32 %v278, %v412
      %v414 = vpop.f32.mrb[0].mxu0
      %v415 = vadd.f32 %v278, %v414
      %416 = vmatprep.mubr.f32.mxu0 0.0
      %417 = vmatmul.mubr.f32.gmra.mrb[0].mxu0 %v308
      %v418 = vpop.f32.mrb[0].mxu0
      %v419 = vadd.f32 %v283, %v418
      %v420 = vpop.f32.mrb[0].mxu0
      %v421 = vadd.f32 %v283, %v420
      %422 = vdwg.mxu0
      %v423 = vmax.f32 %v377, 0.0
      %v424 = vmax.f32 %v379, 0.0
      %v425 = vmax.f32 %v383, 0.0
      %v426 = vmax.f32 %v385, 0.0
      %v427 = vmax.f32 %v389, 0.0
      %v428 = vmax.f32 %v391, 0.0
      %v429 = vmax.f32 %v395, 0.0
      %v430 = vmax.f32 %v397, 0.0
      %v431 = vmax.f32 %v401, 0.0
      %v432 = vmax.f32 %v403, 0.0
      %v433 = vmax.f32 %v407, 0.0
      %v434 = vmax.f32 %v409, 0.0
      %v435 = vmax.f32 %v413, 0.0
      %v436 = vmax.f32 %v415, 0.0
      %v437 = vmax.f32 %v419, 0.0
      %v438 = vmax.f32 %v421, 0.0
      %v439 = vld [vmem:[%s3] sm:$0x1]
      %s440 = sld [smem:[#allocation2]]
      %v441 = vstv %s440
      %vm442 = vcmask 523264
      %v444 = vsel %vm442, %v439, 0
      %446 = vmatprep.subr.mxu0 %v424
      %447 = vmatpush1.msra.mxu0 %v423
      %448 = vmatprep.subr.mxu0 %v426
      %449 = vmatpush1.msra.mxu0 %v425
      %450 = vmatprep.subr.mxu0 %v428
      %451 = vmatpush1.msra.mxu0 %v427
      %452 = vmatprep.subr.mxu0 %v430
      %453 = vmatpush1.msra.mxu0 %v429
      %454 = vmatprep.subr.mxu0 %v432
      %455 = vmatpush1.msra.mxu0 %v431
      %456 = vmatprep.subr.mxu0 %v434
      %457 = vmatpush1.msra.mxu0 %v433
      %458 = vmatprep.subr.mxu0 %v436
      %459 = vmatpush1.msra.mxu0 %v435
      %460 = vmatprep.subr.mxu0 %v438
      %461 = vmatpush1.msra.mxu0 %v437
      %462 = vmatprep.subr.mxu0 0.0
      %463 = vmatpush1.msra.mxu0 0.0
      %464 = vmatprep.subr.mxu0 0.0
      %465 = vmatpush1.msra.mxu0 0.0
      %466 = vmatprep.subr.mxu0 0.0
      %467 = vmatpush1.msra.mxu0 0.0
      %468 = vmatprep.subr.mxu0 0.0
      %469 = vmatpush1.msra.mxu0 0.0
      %470 = vmatprep.subr.mxu0 0.0
      %471 = vmatpush1.msra.mxu0 0.0
      %472 = vmatprep.subr.mxu0 0.0
      %473 = vmatpush1.msra.mxu0 0.0
      %474 = vmatprep.subr.mxu0 0.0
      %475 = vmatpush1.msra.mxu0 0.0
      %476 = vmatprep.subr.mxu0 0.0
      %477 = vmatpush1.msra.mxu0 0.0
      %478 = vmatprep.subr.mxu0 0.0
      %479 = vmatpush1.msra.mxu0 0.0
      %480 = vmatprep.subr.mxu0 0.0
      %481 = vmatpush1.msra.mxu0 0.0
      %482 = vmatprep.subr.mxu0 0.0
      %483 = vmatpush1.msra.mxu0 0.0
      %484 = vmatprep.subr.mxu0 0.0
      %485 = vmatpush1.msra.mxu0 0.0
      %486 = vmatprep.subr.mxu0 0.0
      %487 = vmatpush1.msra.mxu0 0.0
      %488 = vmatprep.subr.mxu0 0.0
      %489 = vmatpush1.msra.mxu0 0.0
      %490 = vmatprep.subr.mxu0 0.0
      %491 = vmatpush1.msra.mxu0 0.0
      %492 = vmatprep.subr.mxu0 0.0
      %493 = vmatpush1.msra.mxu0 0.0
      %494 = vmatprep.subr.mxu0 0.0
      %495 = vmatpush1.msra.mxu0 0.0
      %496 = vmatprep.subr.mxu0 0.0
      %497 = vmatpush1.msra.mxu0 0.0
      %498 = vmatprep.subr.mxu0 0.0
      %499 = vmatpush1.msra.mxu0 0.0
      %500 = vmatprep.subr.mxu0 0.0
      %501 = vmatpush1.msra.mxu0 0.0
      %502 = vmatprep.subr.mxu0 0.0
      %503 = vmatpush1.msra.mxu0 0.0
      %504 = vmatprep.subr.mxu0 0.0
      %505 = vmatpush1.msra.mxu0 0.0
      %506 = vmatprep.subr.mxu0 0.0
      %507 = vmatpush1.msra.mxu0 0.0
      %508 = vmatprep.subr.mxu0 0.0
      %509 = vmatpush1.msra.mxu0 0.0
      %510 = vmatprep.mubr.f32.mxu0 0.0
      %511 = vmatmul.mubr.f32.gmra.mrb[0].mxu0 %v444
      %v512 = vpop.f32.mrb[0].mxu0
      %v513 = vadd.f32 %v441, %v512
      %v514 = vpop.f32.mrb[0].mxu0
      %v515 = vadd.f32 %v441, %v514
      %516 = vdwg.mxu0
      %v519 = vcombine.low %v513, %v515
      %v521 = vunpack.c.l.s4 1966171168
      %v522 = vunpack.c.0.s8 %v521
      %v523 = vlaneseq
      %v524 = vshrl.u32 %v523, 7
      %v525 = vsub.s32 %v522, %v524
      %v526 = vrot.slane %v519, %v525
      %v528 = vunpack.c.l.s4 1966171168
      %v529 = vunpack.c.0.s8 %v528
      %v530 = vlaneseq
      %v531 = vshrl.u32 %v530, 7
      %v532 = vsub.s32 %v529, %v531
      %v533 = vrot.slane %v526, %v532
      %v535 = vlaneseq
      %vm536 = vcmp.ge.s32.totalorder %v535, 0
      %vm537 = vcmp.lt.s32.totalorder %v535, 256
      %vm538 = vmand %vm536, %vm537
      %539 = vst.msk [vmem:[%s225] sm:$0x3] %vm538, %v533
      %s540 = smul.u32 2, %s17
      %p541 = scmp.lt.s32.totalorder %s540, 3
      %s542 = scalar_select %p541, %s540, 3
      %s543 = scalar_lea.vmem %s5, %s542
      // Predicated region
      $region41: #{flownet_forward.1} parent=39 // pred_check
        %p544 = pneg %p145
      $region42: #{flownet_forward.1} parent=39 // pred_check_branch
        %546 = sbr.rel (%p544) target = $region44
      $region43: #{flownet_forward.1} parent=39 // pred_region
        %s547 = smul.u32 2, %s17
      $region44: #{flownet_forward.1} parent=39 // pred_fallthru
        _
    $region40: #{flownet_forward.1} parent=5 // pred_fallthru
      _
    %p548 = scmp.le.s32.totalorder 2, %s12
    // Predicated region
    $region45: #{flownet_forward.1} parent=5 // pred_check
      %p549 = pneg %p548
    $region46: #{flownet_forward.1} parent=5 // pred_check_branch
      %551 = sbr.rel (%p549) target = $region48
    $region47: #{flownet_forward.1} parent=5 // pred_region
      %s552 = ssub.s32 %s12, 2
      // Predicated region
      $region49: #{flownet_forward.1} parent=47 // pred_check
        %p553 = pneg %p151
      $region50: #{flownet_forward.1} parent=47 // pred_check_branch
        %555 = sbr.rel (%p553) target = $region52
      $region51: #{flownet_forward.1} parent=47 // pred_region
        %s556 = smul.u32 2, %s18
        %p557 = scmp.lt.s32.totalorder %s556, 3
        %s558 = scalar_select %p557, %s556, 3
        %s559 = scalar_lea.vmem %s5, %s558
      $region52: #{flownet_forward.1} parent=47 // pred_fallthru
        _
    $region48: #{flownet_forward.1} parent=5 // pred_fallthru
      _
  $region6: #{flownet_forward.1} parent=0 // loop_footer
    %s16 = sadd.s32 1, %s12
  $region7: #{flownet_forward.1} parent=0 // loop_footer_branch
    %11 = sbr.rel target = $region3
  $region8: #{flownet_forward.1} parent=0 // loop_exit
    _

</llo_original>
